<compile_context>
chip_gen: v7x
topology: tpu7x:2x2x1
jax: 0.10.0
libtpu: 0.0.40
codegen_flags: <defaults>
</compile_context>

<pallas_src>
import functools
import math

import jax
import jax.numpy as jnp
from jax.experimental import pallas as pl
from jax.experimental.pallas import tpu as pltpu


def _transd_kernel(es_l_ref, ts_l_ref, es_r_ref, ts_r_ref,
                   rel_es_ref, rel_ts_ref, *out_refs, p, return_ent_emb):
    """Input refs: (D, tile_n).  Outputs: enrg (1, tile_n) and, if
    return_ent_emb, lhs/rhs projections (D, tile_n)."""

    def renorm(x):
        # nn.Embedding(max_norm=1, norm_type=2): rows whose L2 norm exceeds 1
        # are rescaled to norm 1 at lookup time (PyTorch uses eps=1e-7).
        norm = jnp.sqrt(jnp.sum(x * x, axis=0, keepdims=True))        # (1, tn)
        scale = jnp.where(norm > 1.0, 1.0 / (norm + 1e-7), 1.0)
        return x * scale

    es_l = renorm(es_l_ref[...])
    ts_l = renorm(ts_l_ref[...])
    es_r = renorm(es_r_ref[...])
    ts_r = renorm(ts_r_ref[...])
    rel_es = renorm(rel_es_ref[...])
    rel_ts = renorm(rel_ts_ref[...])

    # TransD transfer: proj_e = e + <e, t> * r_t  (dot over the embedding dim,
    # which is the sublane axis in this layout).
    lhs = es_l + jnp.sum(es_l * ts_l, axis=0, keepdims=True) * rel_ts
    rhs = es_r + jnp.sum(es_r * ts_r, axis=0, keepdims=True) * rel_ts

    diff = lhs + rel_es - rhs                                          # (D, tn)
    if p == 2:
        enrg = jnp.sqrt(jnp.sum(diff * diff, axis=0, keepdims=True))
    elif p == 1:
        enrg = jnp.sum(jnp.abs(diff), axis=0, keepdims=True)
    else:
        a = jnp.abs(diff)
        enrg = jnp.power(
            jnp.sum(jnp.power(a, float(p)), axis=0, keepdims=True),
            1.0 / float(p))

    out_refs[0][...] = enrg                                            # (1, tn)
    if return_ent_emb:
        out_refs[1][...] = lhs
        out_refs[2][...] = rhs


def transd_bidecoder_forward(triplets, ent_embeds_w, rel_embeds_w,
                             ent_transfer_w, rel_transfer_w,
                             *, p=2, tile_n=512, return_ent_emb=False):
    """Pallas implementation of TransD_BiDecoder.forward(triplets).

    Returns enrgs of shape (N,) == (lhs + rel - rhs).norm(p, dim=1),
    or (enrgs, lhs, rhs) when return_ent_emb=True.
    """
    N = triplets.shape[0]
    D = ent_embeds_w.shape[1]

    lhs_idx = triplets[:, 0]
    rel_idx = triplets[:, 1]
    rhs_idx = triplets[:, 2]

    # Embedding lookups (data-dependent gathers) stay in XLA; everything after
    # the gather is fused inside the Pallas kernel.
    es_l = jnp.take(ent_embeds_w, lhs_idx, axis=0)
    es_r = jnp.take(ent_embeds_w, rhs_idx, axis=0)
    ts_l = jnp.take(ent_transfer_w, lhs_idx, axis=0)
    ts_r = jnp.take(ent_transfer_w, rhs_idx, axis=0)
    rel_es = jnp.take(rel_embeds_w, rel_idx, axis=0)
    rel_ts = jnp.take(rel_transfer_w, rel_idx, axis=0)

    # Lane-dense layout: put N on the 128-lane axis; pad with pl.cdiv, no
    # divisibility assert.
    tile_n = max(128, (min(int(tile_n), 1024) // 128) * 128)
    tile_n = min(tile_n, pl.cdiv(N, 128) * 128)
    n_pad = pl.cdiv(N, tile_n) * tile_n

    def prep(x):
        x = x.astype(jnp.float32)
        x = jnp.pad(x, ((0, n_pad - N), (0, 0)))   # padded samples -> zero cols
        return x.T                                  # (D, n_pad)

    ins = tuple(prep(x) for x in (es_l, ts_l, es_r, ts_r, rel_es, rel_ts))

    grid = (n_pad // tile_n,)
    in_spec = pl.BlockSpec((D, tile_n), lambda i: (0, i))
    enrg_spec = pl.BlockSpec((1, tile_n), lambda i: (0, i))
    emb_spec = pl.BlockSpec((D, tile_n), lambda i: (0, i))

    out_shapes = [jax.ShapeDtypeStruct((1, n_pad), jnp.float32)]
    out_specs = [enrg_spec]
    bytes_per_sample = 6 * D * 4 + 4
    if return_ent_emb:
        out_shapes += [jax.ShapeDtypeStruct((D, n_pad), jnp.float32)] * 2
        out_specs += [emb_spec, emb_spec]
        bytes_per_sample += 2 * D * 4

    outs = pl.pallas_call(
        functools.partial(_transd_kernel, p=p, return_ent_emb=return_ent_emb),
        out_shape=tuple(out_shapes),
        grid_spec=pltpu.PrefetchScalarGridSpec(
            num_scalar_prefetch=0,
            grid=grid,
            in_specs=[in_spec] * 6,
            out_specs=tuple(out_specs),
        ),
        compiler_params=pltpu.CompilerParams(
            dimension_semantics=("parallel",)),
        cost_estimate=pl.CostEstimate(
            flops=32 * D * n_pad,
            transcendentals=7 * n_pad,
            bytes_accessed=bytes_per_sample * n_pad),
    )(*ins)

    enrgs = outs[0][0, :N]                        # (N,), padded tail dropped
    if not return_ent_emb:
        return enrgs
    lhs = outs[1].T[:N]                           # (N, D)
    rhs = outs[2].T[:N]                           # (N, D)
    return enrgs, lhs, rhs


def reference_forward(triplets, ent_embeds_w, rel_embeds_w,
                      ent_transfer_w, rel_transfer_w, p=2,
                      return_ent_emb=False):
    """Pure-JAX reference of the same forward math."""
    def renorm(x):
        norm = jnp.sqrt(jnp.sum(x * x, axis=1, keepdims=True))
        scale = jnp.where(norm > 1.0, 1.0 / (norm + 1e-7), 1.0)
        return x * scale

    lhs_idx, rel_idx, rhs_idx = triplets[:, 0], triplets[:, 1], triplets[:, 2]
    es_l = renorm(ent_embeds_w[lhs_idx])
    es_r = renorm(ent_embeds_w[rhs_idx])
    ts_l = renorm(ent_transfer_w[lhs_idx])
    ts_r = renorm(ent_transfer_w[rhs_idx])
    rel_es = renorm(rel_embeds_w[rel_idx])
    rel_ts = renorm(rel_transfer_w[rel_idx])

    def transfer(emb, e_t, r_t):
        return emb + jnp.sum(emb * e_t, axis=1, keepdims=True) * r_t

    lhs = transfer(es_l, ts_l, rel_ts)
    rhs = transfer(es_r, ts_r, rel_ts)
    diff = lhs + rel_es - rhs
    if p == 2:
        enrgs = jnp.sqrt(jnp.sum(diff * diff, axis=1))
    elif p == 1:
        enrgs = jnp.sum(jnp.abs(diff), axis=1)
    else:
        enrgs = jnp.sum(jnp.abs(diff) ** p, axis=1) ** (1.0 / p)
    if not return_ent_emb:
        return enrgs
    return enrgs, lhs, rhs


if __name__ == "__main__":
    # Small shapes consistent with the module.
    num_ent = 64
    num_rel = 8
    embed_dim = 32
    p = 2

    key = jax.random.PRNGKey(0)
    k1, k2, k3, k4, k5, k6, k7 = jax.random.split(key, 7)

    # _ent_embeds / rel_embeds: uniform(-r, r), r = 6/sqrt(embed_dim);
    # ent_transfer / rel_transfer keep nn.Embedding's default N(0,1) init.
    r = 6.0 / math.sqrt(embed_dim)
    ent_embeds_w = jax.random.uniform(
        k1, (num_ent, embed_dim), dtype=jnp.float32, minval=-r, maxval=r)
    rel_embeds_w = jax.random.uniform(
        k2, (num_rel, embed_dim), dtype=jnp.float32, minval=-r, maxval=r)
    ent_transfer_w = jax.random.normal(k3, (num_ent, embed_dim), dtype=jnp.float32)
    rel_transfer_w = jax.random.normal(k4, (num_rel, embed_dim), dtype=jnp.float32)

    def make_triplets(n, k_a, k_b, k_c):
        lhs = jax.random.randint(k_a, (n,), 0, num_ent, dtype=jnp.int32)
        rel = jax.random.randint(k_b, (n,), 0, num_rel, dtype=jnp.int32)
        rhs = jax.random.randint(k_c, (n,), 0, num_ent, dtype=jnp.int32)
        return jnp.stack([lhs, rel, rhs], axis=1)

    # Case 1: tiny batch (single tile, heavy padding), energy only.
    triplets = make_triplets(16, k5, k6, k7)
    enrgs = transd_bidecoder_forward(
        triplets, ent_embeds_w, rel_embeds_w, ent_transfer_w, rel_transfer_w, p=p)
    enrgs = jax.block_until_ready(enrgs)
    ref = reference_forward(
        triplets, ent_embeds_w, rel_embeds_w, ent_transfer_w, rel_transfer_w, p=p)
    assert enrgs.shape == (16,)
    assert jnp.allclose(enrgs, ref, atol=1e-5, rtol=1e-5), (enrgs, ref)

    # Case 2: non-multiple-of-128 batch spanning several tiles, with
    # return_ent_emb=True (energies + projected lhs/rhs embeddings).
    k8, k9, k10 = jax.random.split(k7, 3)
    triplets2 = make_triplets(200, k8, k9, k10)
    out2 = transd_bidecoder_forward(
        triplets2, ent_embeds_w, rel_embeds_w, ent_transfer_w, rel_transfer_w,
        p=p, tile_n=128, return_ent_emb=True)
    out2 = jax.block_until_ready(out2)
    ref2 = reference_forward(
        triplets2, ent_embeds_w, rel_embeds_w, ent_transfer_w, rel_transfer_w,
        p=p, return_ent_emb=True)
    assert out2[0].shape == (200,)
    assert out2[1].shape == (200, embed_dim)
    assert out2[2].shape == (200, embed_dim)
    for got, want in zip(out2, ref2):
        assert jnp.allclose(got, want, atol=1e-5, rtol=1e-5), (got, want)

    print("KERNEL_OK")
</pallas_src>

<mosaic_0001>
module attributes {stable_mosaic.version = 11 : i64} {
  func.func @_transd_kernel(%arg0: i32, %arg1: memref<32x128xf32, #tpu.memory_space<vmem>>, %arg2: memref<32x128xf32, #tpu.memory_space<vmem>>, %arg3: memref<32x128xf32, #tpu.memory_space<vmem>>, %arg4: memref<32x128xf32, #tpu.memory_space<vmem>>, %arg5: memref<32x128xf32, #tpu.memory_space<vmem>>, %arg6: memref<32x128xf32, #tpu.memory_space<vmem>>, %arg7: memref<1x128xf32, #tpu.memory_space<vmem>>) attributes {dimension_semantics = [#tpu.dimension_semantics<parallel>], iteration_bounds = array<i64: 1>, scalar_prefetch = 0 : i64, scratch_operands = 0 : i64, tpu.core_type = #tpu.core_type<tc>, window_params = [{transform_indices = @transform_0, window_bounds = array<i64: 32, 128>}, {transform_indices = @transform_1, window_bounds = array<i64: 32, 128>}, {transform_indices = @transform_2, window_bounds = array<i64: 32, 128>}, {transform_indices = @transform_3, window_bounds = array<i64: 32, 128>}, {transform_indices = @transform_4, window_bounds = array<i64: 32, 128>}, {transform_indices = @transform_5, window_bounds = array<i64: 32, 128>}, {transform_indices = @transform_6, window_bounds = array<i64: 1, 128>}]} {
    %c0 = arith.constant 0 : index
    %c0_0 = arith.constant 0 : index
    %0 = vector.load %arg1[%c0, %c0_0] : memref<32x128xf32, #tpu.memory_space<vmem>>, vector<32x128xf32>
    %1 = arith.mulf %0, %0 : vector<32x128xf32>
    %cst = arith.constant dense<0.000000e+00> : vector<128xf32>
    %2 = vector.multi_reduction <add>, %1, %cst [0] : vector<32x128xf32> to vector<128xf32>
    %3 = vector.shape_cast %2 : vector<128xf32> to vector<1x128xf32>
    %4 = math.sqrt %3 : vector<1x128xf32>
    %cst_1 = arith.constant 1.000000e+00 : f32
    %5 = vector.broadcast %cst_1 : f32 to vector<1x128xf32>
    %6 = arith.cmpf ogt, %4, %5 : vector<1x128xf32>
    %cst_2 = arith.constant 1.000000e-07 : f32
    %7 = vector.broadcast %cst_2 : f32 to vector<1x128xf32>
    %8 = arith.addf %4, %7 : vector<1x128xf32>
    %cst_3 = arith.constant 1.000000e+00 : f32
    %9 = vector.broadcast %cst_3 : f32 to vector<1x128xf32>
    %10 = arith.divf %9, %8 : vector<1x128xf32>
    %cst_4 = arith.constant 1.000000e+00 : f32
    %11 = vector.broadcast %cst_4 : f32 to vector<1x128xf32>
    %12 = arith.select %6, %10, %11 : vector<1x128xi1>, vector<1x128xf32>
    %13 = vector.broadcast %12 : vector<1x128xf32> to vector<32x128xf32>
    %14 = arith.mulf %0, %13 : vector<32x128xf32>
    %c0_5 = arith.constant 0 : index
    %c0_6 = arith.constant 0 : index
    %15 = vector.load %arg2[%c0_5, %c0_6] : memref<32x128xf32, #tpu.memory_space<vmem>>, vector<32x128xf32>
    %16 = arith.mulf %15, %15 : vector<32x128xf32>
    %cst_7 = arith.constant dense<0.000000e+00> : vector<128xf32>
    %17 = vector.multi_reduction <add>, %16, %cst_7 [0] : vector<32x128xf32> to vector<128xf32>
    %18 = vector.shape_cast %17 : vector<128xf32> to vector<1x128xf32>
    %19 = math.sqrt %18 : vector<1x128xf32>
    %cst_8 = arith.constant 1.000000e+00 : f32
    %20 = vector.broadcast %cst_8 : f32 to vector<1x128xf32>
    %21 = arith.cmpf ogt, %19, %20 : vector<1x128xf32>
    %cst_9 = arith.constant 1.000000e-07 : f32
    %22 = vector.broadcast %cst_9 : f32 to vector<1x128xf32>
    %23 = arith.addf %19, %22 : vector<1x128xf32>
    %cst_10 = arith.constant 1.000000e+00 : f32
    %24 = vector.broadcast %cst_10 : f32 to vector<1x128xf32>
    %25 = arith.divf %24, %23 : vector<1x128xf32>
    %cst_11 = arith.constant 1.000000e+00 : f32
    %26 = vector.broadcast %cst_11 : f32 to vector<1x128xf32>
    %27 = arith.select %21, %25, %26 : vector<1x128xi1>, vector<1x128xf32>
    %28 = vector.broadcast %27 : vector<1x128xf32> to vector<32x128xf32>
    %29 = arith.mulf %15, %28 : vector<32x128xf32>
    %c0_12 = arith.constant 0 : index
    %c0_13 = arith.constant 0 : index
    %30 = vector.load %arg3[%c0_12, %c0_13] : memref<32x128xf32, #tpu.memory_space<vmem>>, vector<32x128xf32>
    %31 = arith.mulf %30, %30 : vector<32x128xf32>
    %cst_14 = arith.constant dense<0.000000e+00> : vector<128xf32>
    %32 = vector.multi_reduction <add>, %31, %cst_14 [0] : vector<32x128xf32> to vector<128xf32>
    %33 = vector.shape_cast %32 : vector<128xf32> to vector<1x128xf32>
    %34 = math.sqrt %33 : vector<1x128xf32>
    %cst_15 = arith.constant 1.000000e+00 : f32
    %35 = vector.broadcast %cst_15 : f32 to vector<1x128xf32>
    %36 = arith.cmpf ogt, %34, %35 : vector<1x128xf32>
    %cst_16 = arith.constant 1.000000e-07 : f32
    %37 = vector.broadcast %cst_16 : f32 to vector<1x128xf32>
    %38 = arith.addf %34, %37 : vector<1x128xf32>
    %cst_17 = arith.constant 1.000000e+00 : f32
    %39 = vector.broadcast %cst_17 : f32 to vector<1x128xf32>
    %40 = arith.divf %39, %38 : vector<1x128xf32>
    %cst_18 = arith.constant 1.000000e+00 : f32
    %41 = vector.broadcast %cst_18 : f32 to vector<1x128xf32>
    %42 = arith.select %36, %40, %41 : vector<1x128xi1>, vector<1x128xf32>
    %43 = vector.broadcast %42 : vector<1x128xf32> to vector<32x128xf32>
    %44 = arith.mulf %30, %43 : vector<32x128xf32>
    %c0_19 = arith.constant 0 : index
    %c0_20 = arith.constant 0 : index
    %45 = vector.load %arg4[%c0_19, %c0_20] : memref<32x128xf32, #tpu.memory_space<vmem>>, vector<32x128xf32>
    %46 = arith.mulf %45, %45 : vector<32x128xf32>
    %cst_21 = arith.constant dense<0.000000e+00> : vector<128xf32>
    %47 = vector.multi_reduction <add>, %46, %cst_21 [0] : vector<32x128xf32> to vector<128xf32>
    %48 = vector.shape_cast %47 : vector<128xf32> to vector<1x128xf32>
    %49 = math.sqrt %48 : vector<1x128xf32>
    %cst_22 = arith.constant 1.000000e+00 : f32
    %50 = vector.broadcast %cst_22 : f32 to vector<1x128xf32>
    %51 = arith.cmpf ogt, %49, %50 : vector<1x128xf32>
    %cst_23 = arith.constant 1.000000e-07 : f32
    %52 = vector.broadcast %cst_23 : f32 to vector<1x128xf32>
    %53 = arith.addf %49, %52 : vector<1x128xf32>
    %cst_24 = arith.constant 1.000000e+00 : f32
    %54 = vector.broadcast %cst_24 : f32 to vector<1x128xf32>
    %55 = arith.divf %54, %53 : vector<1x128xf32>
    %cst_25 = arith.constant 1.000000e+00 : f32
    %56 = vector.broadcast %cst_25 : f32 to vector<1x128xf32>
    %57 = arith.select %51, %55, %56 : vector<1x128xi1>, vector<1x128xf32>
    %58 = vector.broadcast %57 : vector<1x128xf32> to vector<32x128xf32>
    %59 = arith.mulf %45, %58 : vector<32x128xf32>
    %c0_26 = arith.constant 0 : index
    %c0_27 = arith.constant 0 : index
    %60 = vector.load %arg5[%c0_26, %c0_27] : memref<32x128xf32, #tpu.memory_space<vmem>>, vector<32x128xf32>
    %61 = arith.mulf %60, %60 : vector<32x128xf32>
    %cst_28 = arith.constant dense<0.000000e+00> : vector<128xf32>
    %62 = vector.multi_reduction <add>, %61, %cst_28 [0] : vector<32x128xf32> to vector<128xf32>
    %63 = vector.shape_cast %62 : vector<128xf32> to vector<1x128xf32>
    %64 = math.sqrt %63 : vector<1x128xf32>
    %cst_29 = arith.constant 1.000000e+00 : f32
    %65 = vector.broadcast %cst_29 : f32 to vector<1x128xf32>
    %66 = arith.cmpf ogt, %64, %65 : vector<1x128xf32>
    %cst_30 = arith.constant 1.000000e-07 : f32
    %67 = vector.broadcast %cst_30 : f32 to vector<1x128xf32>
    %68 = arith.addf %64, %67 : vector<1x128xf32>
    %cst_31 = arith.constant 1.000000e+00 : f32
    %69 = vector.broadcast %cst_31 : f32 to vector<1x128xf32>
    %70 = arith.divf %69, %68 : vector<1x128xf32>
    %cst_32 = arith.constant 1.000000e+00 : f32
    %71 = vector.broadcast %cst_32 : f32 to vector<1x128xf32>
    %72 = arith.select %66, %70, %71 : vector<1x128xi1>, vector<1x128xf32>
    %73 = vector.broadcast %72 : vector<1x128xf32> to vector<32x128xf32>
    %74 = arith.mulf %60, %73 : vector<32x128xf32>
    %c0_33 = arith.constant 0 : index
    %c0_34 = arith.constant 0 : index
    %75 = vector.load %arg6[%c0_33, %c0_34] : memref<32x128xf32, #tpu.memory_space<vmem>>, vector<32x128xf32>
    %76 = arith.mulf %75, %75 : vector<32x128xf32>
    %cst_35 = arith.constant dense<0.000000e+00> : vector<128xf32>
    %77 = vector.multi_reduction <add>, %76, %cst_35 [0] : vector<32x128xf32> to vector<128xf32>
    %78 = vector.shape_cast %77 : vector<128xf32> to vector<1x128xf32>
    %79 = math.sqrt %78 : vector<1x128xf32>
    %cst_36 = arith.constant 1.000000e+00 : f32
    %80 = vector.broadcast %cst_36 : f32 to vector<1x128xf32>
    %81 = arith.cmpf ogt, %79, %80 : vector<1x128xf32>
    %cst_37 = arith.constant 1.000000e-07 : f32
    %82 = vector.broadcast %cst_37 : f32 to vector<1x128xf32>
    %83 = arith.addf %79, %82 : vector<1x128xf32>
    %cst_38 = arith.constant 1.000000e+00 : f32
    %84 = vector.broadcast %cst_38 : f32 to vector<1x128xf32>
    %85 = arith.divf %84, %83 : vector<1x128xf32>
    %cst_39 = arith.constant 1.000000e+00 : f32
    %86 = vector.broadcast %cst_39 : f32 to vector<1x128xf32>
    %87 = arith.select %81, %85, %86 : vector<1x128xi1>, vector<1x128xf32>
    %88 = vector.broadcast %87 : vector<1x128xf32> to vector<32x128xf32>
    %89 = arith.mulf %75, %88 : vector<32x128xf32>
    %90 = arith.mulf %14, %29 : vector<32x128xf32>
    %cst_40 = arith.constant dense<0.000000e+00> : vector<128xf32>
    %91 = vector.multi_reduction <add>, %90, %cst_40 [0] : vector<32x128xf32> to vector<128xf32>
    %92 = vector.shape_cast %91 : vector<128xf32> to vector<1x128xf32>
    %93 = vector.broadcast %92 : vector<1x128xf32> to vector<32x128xf32>
    %94 = arith.mulf %93, %89 : vector<32x128xf32>
    %95 = arith.addf %14, %94 : vector<32x128xf32>
    %96 = arith.mulf %44, %59 : vector<32x128xf32>
    %cst_41 = arith.constant dense<0.000000e+00> : vector<128xf32>
    %97 = vector.multi_reduction <add>, %96, %cst_41 [0] : vector<32x128xf32> to vector<128xf32>
    %98 = vector.shape_cast %97 : vector<128xf32> to vector<1x128xf32>
    %99 = vector.broadcast %98 : vector<1x128xf32> to vector<32x128xf32>
    %100 = arith.mulf %99, %89 : vector<32x128xf32>
    %101 = arith.addf %44, %100 : vector<32x128xf32>
    %102 = arith.addf %95, %74 : vector<32x128xf32>
    %103 = arith.subf %102, %101 : vector<32x128xf32>
    %104 = arith.mulf %103, %103 : vector<32x128xf32>
    %cst_42 = arith.constant dense<0.000000e+00> : vector<128xf32>
    %105 = vector.multi_reduction <add>, %104, %cst_42 [0] : vector<32x128xf32> to vector<128xf32>
    %106 = vector.shape_cast %105 : vector<128xf32> to vector<1x128xf32>
    %107 = math.sqrt %106 : vector<1x128xf32>
    %c0_43 = arith.constant 0 : index
    %c0_44 = arith.constant 0 : index
    %108 = vector.load %arg7[%c0_43, %c0_44] : memref<1x128xf32, #tpu.memory_space<vmem>>, vector<1x128xf32>
    tpu.vector_store %arg7[%c0_43, %c0_44], %107 {strides = array<i32>} : memref<1x128xf32, #tpu.memory_space<vmem>>, vector<1x128xf32>,
    return
  }
  func.func @transform_0(%arg0: i32) -> (i32, i32) {
    %c0_i32 = arith.constant 0 : i32
    %c0_i32_0 = arith.constant 0 : i32
    return %c0_i32, %arg0 : i32, i32
  }
  func.func @transform_1(%arg0: i32) -> (i32, i32) {
    %c0_i32 = arith.constant 0 : i32
    %c0_i32_0 = arith.constant 0 : i32
    return %c0_i32, %arg0 : i32, i32
  }
  func.func @transform_2(%arg0: i32) -> (i32, i32) {
    %c0_i32 = arith.constant 0 : i32
    %c0_i32_0 = arith.constant 0 : i32
    return %c0_i32, %arg0 : i32, i32
  }
  func.func @transform_3(%arg0: i32) -> (i32, i32) {
    %c0_i32 = arith.constant 0 : i32
    %c0_i32_0 = arith.constant 0 : i32
    return %c0_i32, %arg0 : i32, i32
  }
  func.func @transform_4(%arg0: i32) -> (i32, i32) {
    %c0_i32 = arith.constant 0 : i32
    %c0_i32_0 = arith.constant 0 : i32
    return %c0_i32, %arg0 : i32, i32
  }
  func.func @transform_5(%arg0: i32) -> (i32, i32) {
    %c0_i32 = arith.constant 0 : i32
    %c0_i32_0 = arith.constant 0 : i32
    return %c0_i32, %arg0 : i32, i32
  }
  func.func @transform_6(%arg0: i32) -> (i32, i32) {
    %c0_i32 = arith.constant 0 : i32
    %c0_i32_0 = arith.constant 0 : i32
    return %c0_i32, %arg0 : i32, i32
  }
}

</mosaic_0001>

<llo_original>
// kernel: tpu_custom_call.1
$region0: #{tpu_custom_call.1}
  #allocation0 [shape = 'u32[]', space=smem, size = 0x4, offset = 0x4, fixed_abs, tag = 'smem constant byte address 0x4 - core index']
  #allocation1 [shape = 'u32[144,128]{1,0:T(1,128)}', space=vmem, size = 0x12000, scoped, tag = 'internal scratch']
  %s0 = inlined_call_operand.hbm [shape: f32[32,128], index: 0, kind: input, shape index: {}]
  %s1 = inlined_call_operand.hbm [shape: f32[32,128], index: 1, kind: input, shape index: {}]
  %s2 = inlined_call_operand.hbm [shape: f32[32,128], index: 2, kind: input, shape index: {}]
  %s3 = inlined_call_operand.hbm [shape: f32[32,128], index: 3, kind: input, shape index: {}]
  %s4 = inlined_call_operand.hbm [shape: f32[32,128], index: 4, kind: input, shape index: {}]
  %s5 = inlined_call_operand.hbm [shape: f32[32,128], index: 5, kind: input, shape index: {}]
  %s6 = inlined_call_operand.hbm [shape: f32[1,128], index: 6, kind: output, shape index: {}]
  %s7 = sld [smem:[#allocation0]]
  $region58: #{tpu_custom_call.1} parent=0
    _
  %s9 = ssub.s32 1, %s7
  %s10 = scalar_select 0, %s9, %s7
  $region1: #{tpu_custom_call.1} parent=0
    #allocation2 [shape = 'u8[16384]{0}', space=vmem, size = 0x4000, scoped, tag = 'input window, operand 0, single buffered']
    #allocation3 [shape = 's32[1]{0}', space=sflag, size = 0x4, scoped, tag = 'scoped memory for tpu_custom_call.1']
    #allocation4 [shape = 's32[1]{0}', space=sflag, size = 0x4, scoped, tag = 'scoped memory for tpu_custom_call.1']
    #allocation5 [shape = 'u8[16384]{0}', space=vmem, size = 0x4000, scoped, tag = 'input window, operand 1, single buffered']
    #allocation6 [shape = 's32[1]{0}', space=sflag, size = 0x4, scoped, tag = 'scoped memory for tpu_custom_call.1']
    #allocation7 [shape = 'u8[16384]{0}', space=vmem, size = 0x4000, scoped, tag = 'input window, operand 2, single buffered']
    #allocation8 [shape = 'u8[16384]{0}', space=vmem, size = 0x4000, scoped, tag = 'input window, operand 3, single buffered']
    #allocation9 [shape = 's32[1]{0}', space=sflag, size = 0x4, scoped, tag = 'scoped memory for tpu_custom_call.1']
    #allocation10 [shape = 'u8[16384]{0}', space=vmem, size = 0x4000, scoped, tag = 'input window, operand 4, single buffered']
    #allocation11 [shape = 'u8[16384]{0}', space=vmem, size = 0x4000, scoped, tag = 'input window, operand 5, single buffered']
    #allocation12 [shape = 's32[1]{0}', space=sflag, size = 0x4, scoped, tag = 'scoped memory for tpu_custom_call.1']
    #allocation13 [shape = 'u8[512]{0}', space=vmem, size = 0x400, scoped, tag = 'output window, operand 0, single buffered']
    %11 = vsyncpa [#allocation3], 0
    %12 = vsyncpa [#allocation6], 0
    %13 = vsyncpa [#allocation9], 0
    %14 = vsyncpa [#allocation12], 0
    %15 = vsyncpa [#allocation4], 0
    // Predicated region
    $region2: #{tpu_custom_call.1} parent=1 // pred_check
      _
    $region3: #{tpu_custom_call.1} parent=1 // pred_check_branch
      %17 = sbr.rel (0) target = $region5
    $region4: #{tpu_custom_call.1} parent=1 // pred_region
      %s19 = ssub.s32 512, 512
      %20 = vsyncadd [#allocation3], %s19
      %s21 = sshll.u32 [#allocation2], 4
      %s22 = int_to_ptr.vmem [resolvable:$true] %s21
      %27 = dma.hbm_to_vmem [thread:$0]  %s0, 512, %s22, [#allocation3], 128, 128, 8
    $region5: #{tpu_custom_call.1} parent=1 // pred_fallthru
      _
    // Predicated region
    $region6: #{tpu_custom_call.1} parent=1 // pred_check
      _
    $region7: #{tpu_custom_call.1} parent=1 // pred_check_branch
      %29 = sbr.rel (0) target = $region9
    $region8: #{tpu_custom_call.1} parent=1 // pred_region
      %s31 = ssub.s32 512, 512
      %32 = vsyncadd [#allocation6], %s31
      %s33 = sshll.u32 [#allocation5], 4
      %s34 = int_to_ptr.vmem [resolvable:$true] %s33
      %39 = dma.hbm_to_vmem [thread:$0]  %s1, 512, %s34, [#allocation6], 128, 128, 8
    $region9: #{tpu_custom_call.1} parent=1 // pred_fallthru
      _
    // Predicated region
    $region10: #{tpu_custom_call.1} parent=1 // pred_check
      _
    $region11: #{tpu_custom_call.1} parent=1 // pred_check_branch
      %41 = sbr.rel (0) target = $region13
    $region12: #{tpu_custom_call.1} parent=1 // pred_region
      %s43 = ssub.s32 512, 512
      %44 = vsyncadd [#allocation6], %s43
      %s45 = sshll.u32 [#allocation7], 4
      %s46 = int_to_ptr.vmem [resolvable:$true] %s45
      %51 = dma.hbm_to_vmem [thread:$0]  %s2, 512, %s46, [#allocation6], 128, 128, 8
    $region13: #{tpu_custom_call.1} parent=1 // pred_fallthru
      _
    // Predicated region
    $region14: #{tpu_custom_call.1} parent=1 // pred_check
      _
    $region15: #{tpu_custom_call.1} parent=1 // pred_check_branch
      %53 = sbr.rel (0) target = $region17
    $region16: #{tpu_custom_call.1} parent=1 // pred_region
      %s55 = ssub.s32 512, 512
      %56 = vsyncadd [#allocation9], %s55
      %s57 = sshll.u32 [#allocation8], 4
      %s58 = int_to_ptr.vmem [resolvable:$true] %s57
      %63 = dma.hbm_to_vmem [thread:$0]  %s3, 512, %s58, [#allocation9], 128, 128, 8
    $region17: #{tpu_custom_call.1} parent=1 // pred_fallthru
      _
    // Predicated region
    $region18: #{tpu_custom_call.1} parent=1 // pred_check
      _
    $region19: #{tpu_custom_call.1} parent=1 // pred_check_branch
      %65 = sbr.rel (0) target = $region21
    $region20: #{tpu_custom_call.1} parent=1 // pred_region
      %s67 = ssub.s32 512, 512
      %68 = vsyncadd [#allocation9], %s67
      %s69 = sshll.u32 [#allocation10], 4
      %s70 = int_to_ptr.vmem [resolvable:$true] %s69
      %75 = dma.hbm_to_vmem [thread:$0]  %s4, 512, %s70, [#allocation9], 128, 128, 8
    $region21: #{tpu_custom_call.1} parent=1 // pred_fallthru
      _
    // Predicated region
    $region22: #{tpu_custom_call.1} parent=1 // pred_check
      _
    $region23: #{tpu_custom_call.1} parent=1 // pred_check_branch
      %77 = sbr.rel (0) target = $region25
    $region24: #{tpu_custom_call.1} parent=1 // pred_region
      %s79 = ssub.s32 512, 512
      %80 = vsyncadd [#allocation12], %s79
      %s81 = sshll.u32 [#allocation11], 4
      %s82 = int_to_ptr.vmem [resolvable:$true] %s81
      %87 = dma.hbm_to_vmem [thread:$0]  %s5, 512, %s82, [#allocation12], 128, 128, 8
    $region25: #{tpu_custom_call.1} parent=1 // pred_fallthru
      _
    // Predicated region
    $region26: #{tpu_custom_call.1} parent=1 // pred_check
      _
    $region27: #{tpu_custom_call.1} parent=1 // pred_check_branch
      %89 = sbr.rel (0) target = $region29
    $region28: #{tpu_custom_call.1} parent=1 // pred_region
      %90 = dma.done [#allocation3], 512
    $region29: #{tpu_custom_call.1} parent=1 // pred_fallthru
      _
    // Predicated region
    $region30: #{tpu_custom_call.1} parent=1 // pred_check
      _
    $region31: #{tpu_custom_call.1} parent=1 // pred_check_branch
      %92 = sbr.rel (0) target = $region33
    $region32: #{tpu_custom_call.1} parent=1 // pred_region
      %93 = dma.done [#allocation6], 512
    $region33: #{tpu_custom_call.1} parent=1 // pred_fallthru
      _
    // Predicated region
    $region34: #{tpu_custom_call.1} parent=1 // pred_check
      _
    $region35: #{tpu_custom_call.1} parent=1 // pred_check_branch
      %95 = sbr.rel (0) target = $region37
    $region36: #{tpu_custom_call.1} parent=1 // pred_region
      %96 = dma.done [#allocation6], 512
    $region37: #{tpu_custom_call.1} parent=1 // pred_fallthru
      _
    // Predicated region
    $region38: #{tpu_custom_call.1} parent=1 // pred_check
      _
    $region39: #{tpu_custom_call.1} parent=1 // pred_check_branch
      %98 = sbr.rel (0) target = $region41
    $region40: #{tpu_custom_call.1} parent=1 // pred_region
      %99 = dma.done [#allocation9], 512
    $region41: #{tpu_custom_call.1} parent=1 // pred_fallthru
      _
    // Predicated region
    $region42: #{tpu_custom_call.1} parent=1 // pred_check
      _
    $region43: #{tpu_custom_call.1} parent=1 // pred_check_branch
      %101 = sbr.rel (0) target = $region45
    $region44: #{tpu_custom_call.1} parent=1 // pred_region
      %102 = dma.done [#allocation9], 512
    $region45: #{tpu_custom_call.1} parent=1 // pred_fallthru
      _
    // Predicated region
    $region46: #{tpu_custom_call.1} parent=1 // pred_check
      _
    $region47: #{tpu_custom_call.1} parent=1 // pred_check_branch
      %104 = sbr.rel (0) target = $region49
    $region48: #{tpu_custom_call.1} parent=1 // pred_region
      %105 = dma.done [#allocation12], 512
    $region49: #{tpu_custom_call.1} parent=1 // pred_fallthru
      _
    %v106 = vld [vmem:[#allocation2] sm:$0xff]
    %v107 = vld [vmem:[#allocation2 + $0x8] sm:$0xff]
    %v108 = vld [vmem:[#allocation2 + $0x10] sm:$0xff]
    %v109 = vld [vmem:[#allocation2 + $0x18] sm:$0xff]
    %v110 = vmul.f32 %v106, %v106
    %v111 = vmul.f32 %v107, %v107
    %v112 = vmul.f32 %v108, %v108
    %v113 = vmul.f32 %v109, %v109
    %v114 = vadd.f32 %v110, %v111
    %v115 = vadd.f32 %v114, %v112
    %v116 = vadd.f32 %v115, %v113
    %v117 = vrot.slane %v116, 4
    %v118 = vadd.f32 %v116, %v117
    %v119 = vrot.slane %v118, 2
    %v120 = vadd.f32 %v118, %v119
    %v121 = vrot.slane %v120, 1
    %v122 = vadd.f32 %v120, %v121
    %v123 = vrsqrt.pop %v122
    %v124 = vmul.f32 %v122, %v123
    %vm125 = vcmp.eq.f32.partialorder %v122, inf
    %v126 = vsel %vm125, %v122, %v124
    %vm127 = vcmp.eq.f32.partialorder %v122, 0.0
    %v128 = vand.u32 %v122, 2147483648
    %v129 = vsel %vm127, %v128, %v126
    %vm130 = vcmp.gt.f32.partialorder %v129, 1.0
    %v131 = vadd.f32 %v129, 1e-07
    %v132 = vrcp.pop %v131
    %v133 = vmul.f32 1.0, %v132
    %v134 = vsel %vm130, %v133, 1.0
    %v135 = vmul.f32 %v106, %v134
    %v136 = vmul.f32 %v107, %v134
    %v137 = vmul.f32 %v108, %v134
    %v138 = vmul.f32 %v109, %v134
    %v139 = vld [vmem:[#allocation5] sm:$0xff]
    %v140 = vld [vmem:[#allocation5 + $0x8] sm:$0xff]
    %v141 = vld [vmem:[#allocation5 + $0x10] sm:$0xff]
    %v142 = vld [vmem:[#allocation5 + $0x18] sm:$0xff]
    %v143 = vmul.f32 %v139, %v139
    %v144 = vmul.f32 %v140, %v140
    %v145 = vmul.f32 %v141, %v141
    %v146 = vmul.f32 %v142, %v142
    %v147 = vadd.f32 %v143, %v144
    %v148 = vadd.f32 %v147, %v145
    %v149 = vadd.f32 %v148, %v146
    %v150 = vrot.slane %v149, 4
    %v151 = vadd.f32 %v149, %v150
    %v152 = vrot.slane %v151, 2
    %v153 = vadd.f32 %v151, %v152
    %v154 = vrot.slane %v153, 1
    %v155 = vadd.f32 %v153, %v154
    %v156 = vrsqrt.pop %v155
    %v157 = vmul.f32 %v155, %v156
    %vm158 = vcmp.eq.f32.partialorder %v155, inf
    %v159 = vsel %vm158, %v155, %v157
    %vm160 = vcmp.eq.f32.partialorder %v155, 0.0
    %v161 = vand.u32 %v155, 2147483648
    %v162 = vsel %vm160, %v161, %v159
    %vm163 = vcmp.gt.f32.partialorder %v162, 1.0
    %v164 = vadd.f32 %v162, 1e-07
    %v165 = vrcp.pop %v164
    %v166 = vmul.f32 1.0, %v165
    %v167 = vsel %vm163, %v166, 1.0
    %v168 = vmul.f32 %v139, %v167
    %v169 = vmul.f32 %v140, %v167
    %v170 = vmul.f32 %v141, %v167
    %v171 = vmul.f32 %v142, %v167
    %v172 = vld [vmem:[#allocation7] sm:$0xff]
    %v173 = vld [vmem:[#allocation7 + $0x8] sm:$0xff]
    %v174 = vld [vmem:[#allocation7 + $0x10] sm:$0xff]
    %v175 = vld [vmem:[#allocation7 + $0x18] sm:$0xff]
    %v176 = vmul.f32 %v172, %v172
    %v177 = vmul.f32 %v173, %v173
    %v178 = vmul.f32 %v174, %v174
    %v179 = vmul.f32 %v175, %v175
    %v180 = vadd.f32 %v176, %v177
    %v181 = vadd.f32 %v180, %v178
    %v182 = vadd.f32 %v181, %v179
    %v183 = vrot.slane %v182, 4
    %v184 = vadd.f32 %v182, %v183
    %v185 = vrot.slane %v184, 2
    %v186 = vadd.f32 %v184, %v185
    %v187 = vrot.slane %v186, 1
    %v188 = vadd.f32 %v186, %v187
    %v189 = vrsqrt.pop %v188
    %v190 = vmul.f32 %v188, %v189
    %vm191 = vcmp.eq.f32.partialorder %v188, inf
    %v192 = vsel %vm191, %v188, %v190
    %vm193 = vcmp.eq.f32.partialorder %v188, 0.0
    %v194 = vand.u32 %v188, 2147483648
    %v195 = vsel %vm193, %v194, %v192
    %vm196 = vcmp.gt.f32.partialorder %v195, 1.0
    %v197 = vadd.f32 %v195, 1e-07
    %v198 = vrcp.pop %v197
    %v199 = vmul.f32 1.0, %v198
    %v200 = vsel %vm196, %v199, 1.0
    %v201 = vmul.f32 %v172, %v200
    %v202 = vmul.f32 %v173, %v200
    %v203 = vmul.f32 %v174, %v200
    %v204 = vmul.f32 %v175, %v200
    %v205 = vld [vmem:[#allocation8] sm:$0xff]
    %v206 = vld [vmem:[#allocation8 + $0x8] sm:$0xff]
    %v207 = vld [vmem:[#allocation8 + $0x10] sm:$0xff]
    %v208 = vld [vmem:[#allocation8 + $0x18] sm:$0xff]
    %v209 = vmul.f32 %v205, %v205
    %v210 = vmul.f32 %v206, %v206
    %v211 = vmul.f32 %v207, %v207
    %v212 = vmul.f32 %v208, %v208
    %v213 = vadd.f32 %v209, %v210
    %v214 = vadd.f32 %v213, %v211
    %v215 = vadd.f32 %v214, %v212
    %v216 = vrot.slane %v215, 4
    %v217 = vadd.f32 %v215, %v216
    %v218 = vrot.slane %v217, 2
    %v219 = vadd.f32 %v217, %v218
    %v220 = vrot.slane %v219, 1
    %v221 = vadd.f32 %v219, %v220
    %v222 = vrsqrt.pop %v221
    %v223 = vmul.f32 %v221, %v222
    %vm224 = vcmp.eq.f32.partialorder %v221, inf
    %v225 = vsel %vm224, %v221, %v223
    %vm226 = vcmp.eq.f32.partialorder %v221, 0.0
    %v227 = vand.u32 %v221, 2147483648
    %v228 = vsel %vm226, %v227, %v225
    %vm229 = vcmp.gt.f32.partialorder %v228, 1.0
    %v230 = vadd.f32 %v228, 1e-07
    %v231 = vrcp.pop %v230
    %v232 = vmul.f32 1.0, %v231
    %v233 = vsel %vm229, %v232, 1.0
    %v234 = vmul.f32 %v205, %v233
    %v235 = vmul.f32 %v206, %v233
    %v236 = vmul.f32 %v207, %v233
    %v237 = vmul.f32 %v208, %v233
    %v238 = vld [vmem:[#allocation10] sm:$0xff]
    %v239 = vld [vmem:[#allocation10 + $0x8] sm:$0xff]
    %v240 = vld [vmem:[#allocation10 + $0x10] sm:$0xff]
    %v241 = vld [vmem:[#allocation10 + $0x18] sm:$0xff]
    %v242 = vmul.f32 %v238, %v238
    %v243 = vmul.f32 %v239, %v239
    %v244 = vmul.f32 %v240, %v240
    %v245 = vmul.f32 %v241, %v241
    %v246 = vadd.f32 %v242, %v243
    %v247 = vadd.f32 %v246, %v244
    %v248 = vadd.f32 %v247, %v245
    %v249 = vrot.slane %v248, 4
    %v250 = vadd.f32 %v248, %v249
    %v251 = vrot.slane %v250, 2
    %v252 = vadd.f32 %v250, %v251
    %v253 = vrot.slane %v252, 1
    %v254 = vadd.f32 %v252, %v253
    %v255 = vrsqrt.pop %v254
    %v256 = vmul.f32 %v254, %v255
    %vm257 = vcmp.eq.f32.partialorder %v254, inf
    %v258 = vsel %vm257, %v254, %v256
    %vm259 = vcmp.eq.f32.partialorder %v254, 0.0
    %v260 = vand.u32 %v254, 2147483648
    %v261 = vsel %vm259, %v260, %v258
    %vm262 = vcmp.gt.f32.partialorder %v261, 1.0
    %v263 = vadd.f32 %v261, 1e-07
    %v264 = vrcp.pop %v263
    %v265 = vmul.f32 1.0, %v264
    %v266 = vsel %vm262, %v265, 1.0
    %v267 = vmul.f32 %v238, %v266
    %v268 = vmul.f32 %v239, %v266
    %v269 = vmul.f32 %v240, %v266
    %v270 = vmul.f32 %v241, %v266
    %v271 = vld [vmem:[#allocation11] sm:$0xff]
    %v272 = vld [vmem:[#allocation11 + $0x8] sm:$0xff]
    %v273 = vld [vmem:[#allocation11 + $0x10] sm:$0xff]
    %v274 = vld [vmem:[#allocation11 + $0x18] sm:$0xff]
    %v275 = vmul.f32 %v271, %v271
    %v276 = vmul.f32 %v272, %v272
    %v277 = vmul.f32 %v273, %v273
    %v278 = vmul.f32 %v274, %v274
    %v279 = vadd.f32 %v275, %v276
    %v280 = vadd.f32 %v279, %v277
    %v281 = vadd.f32 %v280, %v278
    %v282 = vrot.slane %v281, 4
    %v283 = vadd.f32 %v281, %v282
    %v284 = vrot.slane %v283, 2
    %v285 = vadd.f32 %v283, %v284
    %v286 = vrot.slane %v285, 1
    %v287 = vadd.f32 %v285, %v286
    %v288 = vrsqrt.pop %v287
    %v289 = vmul.f32 %v287, %v288
    %vm290 = vcmp.eq.f32.partialorder %v287, inf
    %v291 = vsel %vm290, %v287, %v289
    %vm292 = vcmp.eq.f32.partialorder %v287, 0.0
    %v293 = vand.u32 %v287, 2147483648
    %v294 = vsel %vm292, %v293, %v291
    %vm295 = vcmp.gt.f32.partialorder %v294, 1.0
    %v296 = vadd.f32 %v294, 1e-07
    %v297 = vrcp.pop %v296
    %v298 = vmul.f32 1.0, %v297
    %v299 = vsel %vm295, %v298, 1.0
    %v300 = vmul.f32 %v271, %v299
    %v301 = vmul.f32 %v272, %v299
    %v302 = vmul.f32 %v273, %v299
    %v303 = vmul.f32 %v274, %v299
    %v304 = vmul.f32 %v135, %v168
    %v305 = vmul.f32 %v136, %v169
    %v306 = vmul.f32 %v137, %v170
    %v307 = vmul.f32 %v138, %v171
    %v308 = vadd.f32 %v304, %v305
    %v309 = vadd.f32 %v308, %v306
    %v310 = vadd.f32 %v309, %v307
    %v311 = vrot.slane %v310, 4
    %v312 = vadd.f32 %v310, %v311
    %v313 = vrot.slane %v312, 2
    %v314 = vadd.f32 %v312, %v313
    %v315 = vrot.slane %v314, 1
    %v316 = vadd.f32 %v314, %v315
    %v317 = vmul.f32 %v316, %v300
    %v318 = vmul.f32 %v316, %v301
    %v319 = vmul.f32 %v316, %v302
    %v320 = vmul.f32 %v316, %v303
    %v321 = vadd.f32 %v135, %v317
    %v322 = vadd.f32 %v136, %v318
    %v323 = vadd.f32 %v137, %v319
    %v324 = vadd.f32 %v138, %v320
    %v325 = vmul.f32 %v201, %v234
    %v326 = vmul.f32 %v202, %v235
    %v327 = vmul.f32 %v203, %v236
    %v328 = vmul.f32 %v204, %v237
    %v329 = vadd.f32 %v325, %v326
    %v330 = vadd.f32 %v329, %v327
    %v331 = vadd.f32 %v330, %v328
    %v332 = vrot.slane %v331, 4
    %v333 = vadd.f32 %v331, %v332
    %v334 = vrot.slane %v333, 2
    %v335 = vadd.f32 %v333, %v334
    %v336 = vrot.slane %v335, 1
    %v337 = vadd.f32 %v335, %v336
    %v338 = vmul.f32 %v337, %v300
    %v339 = vmul.f32 %v337, %v301
    %v340 = vmul.f32 %v337, %v302
    %v341 = vmul.f32 %v337, %v303
    %v342 = vadd.f32 %v201, %v338
    %v343 = vadd.f32 %v202, %v339
    %v344 = vadd.f32 %v203, %v340
    %v345 = vadd.f32 %v204, %v341
    %v346 = vadd.f32 %v321, %v267
    %v347 = vadd.f32 %v322, %v268
    %v348 = vadd.f32 %v323, %v269
    %v349 = vadd.f32 %v324, %v270
    %v350 = vsub.f32 %v346, %v342
    %v351 = vsub.f32 %v347, %v343
    %v352 = vsub.f32 %v348, %v344
    %v353 = vsub.f32 %v349, %v345
    %v354 = vmul.f32 %v350, %v350
    %v355 = vmul.f32 %v351, %v351
    %v356 = vmul.f32 %v352, %v352
    %v357 = vmul.f32 %v353, %v353
    %v358 = vadd.f32 %v354, %v355
    %v359 = vadd.f32 %v358, %v356
    %v360 = vadd.f32 %v359, %v357
    %v361 = vrot.slane %v360, 4
    %v362 = vadd.f32 %v360, %v361
    %v363 = vrot.slane %v362, 2
    %v364 = vadd.f32 %v362, %v363
    %v365 = vrot.slane %v364, 1
    %v366 = vadd.f32 %v364, %v365
    %v367 = vrsqrt.pop %v366
    %v368 = vmul.f32 %v366, %v367
    %vm369 = vcmp.eq.f32.partialorder %v366, inf
    %v370 = vsel %vm369, %v366, %v368
    %vm371 = vcmp.eq.f32.partialorder %v366, 0.0
    %v372 = vand.u32 %v366, 2147483648
    %v373 = vsel %vm371, %v372, %v370
    %374 = vst [vmem:[#allocation13] sm:$0x1] %v373
    // Predicated region
    $region50: #{tpu_custom_call.1} parent=1 // pred_check
      _
    $region51: #{tpu_custom_call.1} parent=1 // pred_check_branch
      %376 = sbr.rel (0) target = $region53
    $region52: #{tpu_custom_call.1} parent=1 // pred_region
      %s378 = ssub.s32 16, 16
      %379 = vsyncadd [#allocation4], %s378
      %s381 = sshll.u32 [#allocation13], 4
      %s382 = int_to_ptr.vmem [resolvable:$true] %s381
      %384 = dma.vmem_to_hbm [thread:$0]  %s382, 16, %s6, [#allocation4]
    $region53: #{tpu_custom_call.1} parent=1 // pred_fallthru
      _
    // Predicated region
    $region54: #{tpu_custom_call.1} parent=1 // pred_check
      _
    $region55: #{tpu_custom_call.1} parent=1 // pred_check_branch
      %386 = sbr.rel (0) target = $region57
    $region56: #{tpu_custom_call.1} parent=1 // pred_region
      %387 = dma.done [#allocation4], 16
    $region57: #{tpu_custom_call.1} parent=1 // pred_fallthru
      _
    %388 = vsyncpa [#allocation3], 1
    %389 = vsyncpa [#allocation6], 1
    %390 = vsyncpa [#allocation9], 1
    %391 = vsyncpa [#allocation12], 1
    %392 = vsyncpa [#allocation4], 1

</llo_original>
